<compile_context>
chip_gen: v6e
topology: v6e:2x2x1
jax: 0.10.0
libtpu: 0.0.40
codegen_flags: <defaults>
</compile_context>

<pallas_src>
import jax
import jax.numpy as jnp
from jax import lax
from jax.experimental import pallas as pl
from jax.experimental.pallas import tpu as pltpu

IN_DIM = 9
HID_DIM = 64
OUT_DIM = 7
IN_PAD = 16          # contraction dim 9 -> 16 (sublane multiple); col 9 = folded b1
OUT_PAD = 8          # output dim 7 -> 8 (sublane multiple)
MAX_TILE_B = 16384   # per-grid-step batch tile cap (safe on v5e/v6e/v7x w/ chunking)
LANE = 256           # batch padding granularity (2 * lane width)


def _round_up(n, m):
    return ((n + m - 1) // m) * m


def _make_kernel(chunk):
    """Kernel over one (IN_PAD, tile_b) input tile, chunked along the lane axis."""

    def mlp_kernel(x_ref, w1_ref, w2_ref, b2_ref, w3_ref, b3_ref, o_ref):
        tile_b = x_ref.shape[1]
        n_chunks = tile_b // chunk

        # Hoist the (tiny, VMEM-resident) weights/biases out of the chunk loop.
        w1 = w1_ref[...]          # (HID, IN_PAD) bf16, col IN_DIM holds b1
        w2 = w2_ref[...]          # (HID, HID)    bf16
        w3 = w3_ref[...]          # (OUT_PAD, HID) bf16
        b2 = b2_ref[...]          # (HID, 1)      f32
        b3 = b3_ref[...]          # (OUT_PAD, 1)  f32

        def body(c, carry):
            start = pl.multiple_of(c * chunk, chunk)
            xc = x_ref[:, pl.ds(start, chunk)]                       # (IN_PAD, ck) bf16

            # Layer 1: bias already folded into w1 via x row IN_DIM == 1.
            h1 = jnp.dot(w1, xc, preferred_element_type=jnp.float32)
            h1 = jnp.maximum(h1, 0.0).astype(jnp.bfloat16)           # (HID, ck)

            h2 = jnp.dot(w2, h1, preferred_element_type=jnp.float32) + b2
            h2 = jnp.maximum(h2, 0.0).astype(jnp.bfloat16)           # (HID, ck)

            logits = jnp.dot(w3, h2, preferred_element_type=jnp.float32) + b3
            o_ref[:, pl.ds(start, chunk)] = logits.astype(o_ref.dtype)
            return carry

        lax.fori_loop(0, n_chunks, body, 0, unroll=True)

    return mlp_kernel


def _choose_tiling(batch):
    # Minimal batch padding: only round each tile up to a lane multiple (256),
    # never up to a fixed 8192/16384 boundary.
    n_tiles = max(1, -(-batch // MAX_TILE_B))       # cdiv
    tile_b = _round_up(-(-batch // n_tiles), LANE)  # multiple of 256
    b_pad = n_tiles * tile_b
    chunk = 512 if tile_b % 512 == 0 else 256       # keep (64, chunk) f32 in vregs
    return n_tiles, tile_b, b_pad, chunk


def mlp_forward(x, params):
    """x: (batch, 9) float32. Returns (batch, 7) float32 logits."""
    w1, w2, b2, w3, b3 = params
    batch, in_dim = x.shape
    assert in_dim == IN_DIM, in_dim

    n_tiles, tile_b, b_pad, chunk = _choose_tiling(batch)

    # Fused input relayout: bf16 cast FIRST, then append the bias-fold ones
    # column, one transpose, one pad to (IN_PAD, b_pad). Padded batch columns /
    # padded feature rows are zeros (their outputs are sliced off below).
    x_bf = x.astype(jnp.bfloat16)
    x_aug = jnp.concatenate([x_bf, jnp.ones((batch, 1), jnp.bfloat16)], axis=1)
    x_t = jnp.pad(x_aug.T, ((0, IN_PAD - IN_DIM - 1), (0, b_pad - batch)))

    def resident(shape):  # weights/biases: same block every step -> stay in VMEM
        return pl.BlockSpec(shape, lambda i: (0, 0))

    cost = pl.CostEstimate(
        flops=2 * b_pad * (IN_PAD * HID_DIM + HID_DIM * HID_DIM + HID_DIM * OUT_PAD),
        transcendentals=0,
        bytes_accessed=(
            b_pad * (IN_PAD * 2 + OUT_PAD * 4)
            + (w1.size + w2.size + w3.size) * 2
            + (b2.size + b3.size) * 4
        ),
    )

    out_t = pl.pallas_call(
        _make_kernel(chunk),
        out_shape=jax.ShapeDtypeStruct((OUT_PAD, b_pad), jnp.float32),
        grid=(n_tiles,),
        in_specs=[
            pl.BlockSpec((IN_PAD, tile_b), lambda i: (0, i)),   # x tile (pipelined)
            resident(w1.shape),
            resident(w2.shape), resident(b2.shape),
            resident(w3.shape), resident(b3.shape),
        ],
        out_specs=pl.BlockSpec((OUT_PAD, tile_b), lambda i: (0, i)),
        compiler_params=pltpu.CompilerParams(
            dimension_semantics=("parallel",),   # v7x: 2 TCs share the batch grid
        ),
        cost_estimate=cost,
    )(x_t, w1, w2, b2, w3, b3)

    # Drop padded output row / batch columns; back to (batch, 7) row-major f32.
    # A consumer that accepts feature-major bf16 logits should take out_t
    # directly and skip this slice+transpose (pure-bandwidth epilogue).
    return out_t[:OUT_DIM, :batch].T


def xavier_uniform(key, out_dim, in_dim, dtype=jnp.float32):
    # Matches torch.nn.init.xavier_uniform_: bound = sqrt(6 / (fan_in + fan_out))
    limit = (6.0 / (in_dim + out_dim)) ** 0.5
    return jax.random.uniform(key, (out_dim, in_dim), dtype, -limit, limit)


def init_params(key):
    k1, k2, k3 = jax.random.split(key, 3)
    # PyTorch (out, in) layout. K padded 9->16; b1 (zero, per initialize_weights)
    # folded into w1[:, 9]. Weights bf16 (native MXU path); b2/b3 f32 (out, 1)
    # columns so they broadcast along the lane/batch axis inside the kernel.
    b1 = jnp.zeros((HID_DIM,), jnp.float32)
    w1 = (jnp.zeros((HID_DIM, IN_PAD), jnp.float32)
          .at[:, :IN_DIM].set(xavier_uniform(k1, HID_DIM, IN_DIM))
          .at[:, IN_DIM].set(b1)                       # folded bias column
          .astype(jnp.bfloat16))
    w2 = xavier_uniform(k2, HID_DIM, HID_DIM).astype(jnp.bfloat16)
    b2 = jnp.zeros((HID_DIM, 1), jnp.float32)
    w3 = (jnp.zeros((OUT_PAD, HID_DIM), jnp.float32)
          .at[:OUT_DIM, :].set(xavier_uniform(k3, OUT_DIM, HID_DIM))
          .astype(jnp.bfloat16))
    b3 = jnp.zeros((OUT_PAD, 1), jnp.float32)
    return (w1, w2, b2, w3, b3)


def reference_forward(x, params):
    # Pure-JAX reference with the same precision scheme as the kernel
    # (bf16 operands, folded b1, f32 accumulation / bias / ReLU).
    # TODO(synk): bf16 MXU operands differ from a pure-f32 PyTorch forward by
    # ~1e-2 relative; this reference matches the kernel's precision scheme.
    w1, w2, b2, w3, b3 = params
    batch = x.shape[0]
    xb = jnp.concatenate(
        [x.astype(jnp.bfloat16),
         jnp.ones((batch, 1), jnp.bfloat16),
         jnp.zeros((batch, IN_PAD - IN_DIM - 1), jnp.bfloat16)], axis=1)
    h1 = jnp.maximum(
        jnp.dot(xb, w1.T, preferred_element_type=jnp.float32), 0.0
    ).astype(jnp.bfloat16)
    h2 = jnp.maximum(
        jnp.dot(h1, w2.T, preferred_element_type=jnp.float32) + b2.T, 0.0
    ).astype(jnp.bfloat16)
    logits = jnp.dot(h2, w3.T, preferred_element_type=jnp.float32) + b3.T
    return logits[:, :OUT_DIM]


if __name__ == "__main__":
    key = jax.random.PRNGKey(0)
    key_x, key_p = jax.random.split(key)

    batch = 8
    x = jax.random.normal(key_x, (batch, IN_DIM), jnp.float32)
    params = init_params(key_p)

    out = jax.block_until_ready(mlp_forward(x, params))
    ref = reference_forward(x, params)

    assert out.shape == (batch, OUT_DIM), out.shape
    max_err = float(jnp.max(jnp.abs(out - ref)))
    assert jnp.allclose(out, ref, atol=1e-3, rtol=1e-3), f"mismatch, max_err={max_err}"

    print("KERNEL_OK")
</pallas_src>

<mosaic_0001>
module attributes {stable_mosaic.version = 11 : i64} {
  func.func @mlp_kernel(%arg0: i32, %arg1: memref<16x256xbf16, #tpu.memory_space<vmem>>, %arg2: memref<64x16xbf16, #tpu.memory_space<vmem>>, %arg3: memref<64x64xbf16, #tpu.memory_space<vmem>>, %arg4: memref<64x1xf32, #tpu.memory_space<vmem>>, %arg5: memref<8x64xbf16, #tpu.memory_space<vmem>>, %arg6: memref<8x1xf32, #tpu.memory_space<vmem>>, %arg7: memref<8x256xf32, #tpu.memory_space<vmem>>) attributes {dimension_semantics = [#tpu.dimension_semantics<parallel>], iteration_bounds = array<i64: 1>, scalar_prefetch = 0 : i64, scratch_operands = 0 : i64, tpu.core_type = #tpu.core_type<tc>, window_params = [{transform_indices = @transform_0, window_bounds = array<i64: 16, 256>}, {pipeline_mode = #tpu.pipeline_mode<synchronous>, transform_indices = @transform_1, window_bounds = array<i64: 64, 16>}, {pipeline_mode = #tpu.pipeline_mode<synchronous>, transform_indices = @transform_2, window_bounds = array<i64: 64, 64>}, {pipeline_mode = #tpu.pipeline_mode<synchronous>, transform_indices = @transform_3, window_bounds = array<i64: 64, 1>}, {pipeline_mode = #tpu.pipeline_mode<synchronous>, transform_indices = @transform_4, window_bounds = array<i64: 8, 64>}, {pipeline_mode = #tpu.pipeline_mode<synchronous>, transform_indices = @transform_5, window_bounds = array<i64: 8, 1>}, {transform_indices = @transform_6, window_bounds = array<i64: 8, 256>}]} {
    %c0 = arith.constant 0 : index
    %c0_0 = arith.constant 0 : index
    %0 = vector.load %arg2[%c0, %c0_0] : memref<64x16xbf16, #tpu.memory_space<vmem>>, vector<64x16xbf16>
    %c0_1 = arith.constant 0 : index
    %c0_2 = arith.constant 0 : index
    %1 = vector.load %arg3[%c0_1, %c0_2] : memref<64x64xbf16, #tpu.memory_space<vmem>>, vector<64x64xbf16>
    %c0_3 = arith.constant 0 : index
    %c0_4 = arith.constant 0 : index
    %2 = vector.load %arg5[%c0_3, %c0_4] : memref<8x64xbf16, #tpu.memory_space<vmem>>, vector<8x64xbf16>
    %c0_5 = arith.constant 0 : index
    %c0_6 = arith.constant 0 : index
    %3 = vector.load %arg4[%c0_5, %c0_6] : memref<64x1xf32, #tpu.memory_space<vmem>>, vector<64x1xf32>
    %c0_7 = arith.constant 0 : index
    %c0_8 = arith.constant 0 : index
    %4 = vector.load %arg6[%c0_7, %c0_8] : memref<8x1xf32, #tpu.memory_space<vmem>>, vector<8x1xf32>
    %c0_i32 = arith.constant 0 : i32
    %c256_i32 = arith.constant 256 : i32
    %5 = arith.muli %c0_i32, %c256_i32 : i32
    %6 = tpu.assume_multiple %5, 256 : i32
    %c0_9 = arith.constant 0 : index
    %7 = arith.index_cast %6 : i32 to index
    %8 = vector.load %arg1[%c0_9, %7] : memref<16x256xbf16, #tpu.memory_space<vmem>>, vector<16x256xbf16>
    %cst = arith.constant dense<0.000000e+00> : vector<64x256xf32>
    %9 = tpu.matmul %0, %8, %cst {dimension_numbers = #tpu.dot_dimension_numbers<[1], [0], [0], [1], [0, 0, 1, 1], [], []>} : vector<64x16xbf16>, vector<16x256xbf16>, vector<64x256xf32> -> vector<64x256xf32>
    %cst_10 = arith.constant 0.000000e+00 : f32
    %10 = vector.broadcast %cst_10 : f32 to vector<64x256xf32>
    %11 = arith.maximumf %9, %10 : vector<64x256xf32>
    %12 = arith.truncf %11 : vector<64x256xf32> to vector<64x256xbf16>
    %cst_11 = arith.constant dense<0.000000e+00> : vector<64x256xf32>
    %13 = tpu.matmul %1, %12, %cst_11 {dimension_numbers = #tpu.dot_dimension_numbers<[1], [0], [0], [1], [0, 0, 1, 1], [], []>} : vector<64x64xbf16>, vector<64x256xbf16>, vector<64x256xf32> -> vector<64x256xf32>
    %14 = vector.broadcast %3 : vector<64x1xf32> to vector<64x256xf32>
    %15 = arith.addf %13, %14 : vector<64x256xf32>
    %cst_12 = arith.constant 0.000000e+00 : f32
    %16 = vector.broadcast %cst_12 : f32 to vector<64x256xf32>
    %17 = arith.maximumf %15, %16 : vector<64x256xf32>
    %18 = arith.truncf %17 : vector<64x256xf32> to vector<64x256xbf16>
    %cst_13 = arith.constant dense<0.000000e+00> : vector<8x256xf32>
    %19 = tpu.matmul %2, %18, %cst_13 {dimension_numbers = #tpu.dot_dimension_numbers<[1], [0], [0], [1], [0, 0, 1, 1], [], []>} : vector<8x64xbf16>, vector<64x256xbf16>, vector<8x256xf32> -> vector<8x256xf32>
    %20 = vector.broadcast %4 : vector<8x1xf32> to vector<8x256xf32>
    %21 = arith.addf %19, %20 : vector<8x256xf32>
    %c0_14 = arith.constant 0 : index
    %22 = arith.index_cast %6 : i32 to index
    %23 = vector.load %arg7[%c0_14, %22] : memref<8x256xf32, #tpu.memory_space<vmem>>, vector<8x256xf32>
    tpu.vector_store %arg7[%c0_14, %22], %21 {strides = array<i32>} : memref<8x256xf32, #tpu.memory_space<vmem>>, vector<8x256xf32>,
    %c1_i32 = arith.constant 1 : i32
    return
  }
  func.func @transform_0(%arg0: i32) -> (i32, i32) {
    %c0_i32 = arith.constant 0 : i32
    %c0_i32_0 = arith.constant 0 : i32
    return %c0_i32, %arg0 : i32, i32
  }
  func.func @transform_1(%arg0: i32) -> (i32, i32) {
    %c0_i32 = arith.constant 0 : i32
    %c0_i32_0 = arith.constant 0 : i32
    %c0_i32_1 = arith.constant 0 : i32
    return %c0_i32, %c0_i32_0 : i32, i32
  }
  func.func @transform_2(%arg0: i32) -> (i32, i32) {
    %c0_i32 = arith.constant 0 : i32
    %c0_i32_0 = arith.constant 0 : i32
    %c0_i32_1 = arith.constant 0 : i32
    return %c0_i32, %c0_i32_0 : i32, i32
  }
  func.func @transform_3(%arg0: i32) -> (i32, i32) {
    %c0_i32 = arith.constant 0 : i32
    %c0_i32_0 = arith.constant 0 : i32
    %c0_i32_1 = arith.constant 0 : i32
    return %c0_i32, %c0_i32_0 : i32, i32
  }
  func.func @transform_4(%arg0: i32) -> (i32, i32) {
    %c0_i32 = arith.constant 0 : i32
    %c0_i32_0 = arith.constant 0 : i32
    %c0_i32_1 = arith.constant 0 : i32
    return %c0_i32, %c0_i32_0 : i32, i32
  }
  func.func @transform_5(%arg0: i32) -> (i32, i32) {
    %c0_i32 = arith.constant 0 : i32
    %c0_i32_0 = arith.constant 0 : i32
    %c0_i32_1 = arith.constant 0 : i32
    return %c0_i32, %c0_i32_0 : i32, i32
  }
  func.func @transform_6(%arg0: i32) -> (i32, i32) {
    %c0_i32 = arith.constant 0 : i32
    %c0_i32_0 = arith.constant 0 : i32
    return %c0_i32, %arg0 : i32, i32
  }
}

</mosaic_0001>

<llo_original>
// kernel: tpu_custom_call.1
$region0: #{tpu_custom_call.1}
  #allocation0 [shape = 'u32[]', space=smem, size = 0x4, offset = 0x4, fixed_abs, tag = 'smem constant byte address 0x4 - core index']
  #allocation1 [shape = 'u32[144,128]{1,0:T(1,128)}', space=vmem, size = 0x12000, scoped, tag = 'internal scratch']
  %s0 = inlined_call_operand.vmem [shape: bf16[16,256], index: 0, kind: input, shape index: {}]
  %s1 = inlined_call_operand.vmem [shape: bf16[64,16], index: 1, kind: input, shape index: {}]
  %s2 = inlined_call_operand.vmem [shape: bf16[64,64], index: 2, kind: input, shape index: {}]
  %s3 = inlined_call_operand.vmem [shape: f32[64,1], index: 3, kind: input, shape index: {}]
  %s4 = inlined_call_operand.vmem [shape: bf16[8,64], index: 4, kind: input, shape index: {}]
  %s5 = inlined_call_operand.vmem [shape: f32[8,1], index: 5, kind: input, shape index: {}]
  %s6 = inlined_call_operand.hbm [shape: f32[8,256], index: 6, kind: output, shape index: {}]
  %s7 = sld [smem:[#allocation0]]
  $region34: #{tpu_custom_call.1} parent=0
    _
  %s9 = ssub.s32 1, %s7
  %s10 = scalar_select 0, %s9, %s7
  $region1: #{tpu_custom_call.1} parent=0
    #allocation2 [shape = 'u8[8192]{0}', space=vmem, size = 0x2000, scoped, tag = 'output window, operand 0, single buffered']
    #allocation3 [shape = 's32[1]{0}', space=sflag, size = 0x4, scoped, tag = 'scoped memory for tpu_custom_call.1']
    %11 = vsyncpa [#allocation3], 0
    // Predicated region
    $region2: #{tpu_custom_call.1} parent=1 // pred_check
      _
    $region3: #{tpu_custom_call.1} parent=1 // pred_check_branch
      %13 = sbr.rel (0) target = $region5
    $region4: #{tpu_custom_call.1} parent=1 // pred_region
      _
    $region5: #{tpu_custom_call.1} parent=1 // pred_fallthru
      _
    // Predicated region
    $region6: #{tpu_custom_call.1} parent=1 // pred_check
      _
    $region7: #{tpu_custom_call.1} parent=1 // pred_check_branch
      %15 = sbr.rel (0) target = $region9
    $region8: #{tpu_custom_call.1} parent=1 // pred_region
      _
    $region9: #{tpu_custom_call.1} parent=1 // pred_fallthru
      _
    // Predicated region
    $region10: #{tpu_custom_call.1} parent=1 // pred_check
      _
    $region11: #{tpu_custom_call.1} parent=1 // pred_check_branch
      %17 = sbr.rel (0) target = $region13
    $region12: #{tpu_custom_call.1} parent=1 // pred_region
      _
    $region13: #{tpu_custom_call.1} parent=1 // pred_fallthru
      _
    // Predicated region
    $region14: #{tpu_custom_call.1} parent=1 // pred_check
      _
    $region15: #{tpu_custom_call.1} parent=1 // pred_check_branch
      %19 = sbr.rel (0) target = $region17
    $region16: #{tpu_custom_call.1} parent=1 // pred_region
      _
    $region17: #{tpu_custom_call.1} parent=1 // pred_fallthru
      _
    // Predicated region
    $region18: #{tpu_custom_call.1} parent=1 // pred_check
      _
    $region19: #{tpu_custom_call.1} parent=1 // pred_check_branch
      %21 = sbr.rel (0) target = $region21
    $region20: #{tpu_custom_call.1} parent=1 // pred_region
      _
    $region21: #{tpu_custom_call.1} parent=1 // pred_fallthru
      _
    // Predicated region
    $region22: #{tpu_custom_call.1} parent=1 // pred_check
      _
    $region23: #{tpu_custom_call.1} parent=1 // pred_check_branch
      %23 = sbr.rel (0) target = $region25
    $region24: #{tpu_custom_call.1} parent=1 // pred_region
      _
    $region25: #{tpu_custom_call.1} parent=1 // pred_fallthru
      _
    %v25 = vld [vmem:[%s1] sm:$0xf]
    %v26 = vld [vmem:[%s1 + $0x4] sm:$0xf]
    %v27 = vld [vmem:[%s1 + $0x8] sm:$0xf]
    %v28 = vld [vmem:[%s1 + $0xc] sm:$0xf]
    %v29 = vld [vmem:[%s1 + $0x10] sm:$0xf]
    %v30 = vld [vmem:[%s1 + $0x14] sm:$0xf]
    %v31 = vld [vmem:[%s1 + $0x18] sm:$0xf]
    %v32 = vld [vmem:[%s1 + $0x1c] sm:$0xf]
    %v33 = vld [vmem:[%s2] sm:$0xf]
    %v34 = vld [vmem:[%s2 + $0x4] sm:$0xf]
    %v35 = vld [vmem:[%s2 + $0x8] sm:$0xf]
    %v36 = vld [vmem:[%s2 + $0xc] sm:$0xf]
    %v37 = vld [vmem:[%s2 + $0x10] sm:$0xf]
    %v38 = vld [vmem:[%s2 + $0x14] sm:$0xf]
    %v39 = vld [vmem:[%s2 + $0x18] sm:$0xf]
    %v40 = vld [vmem:[%s2 + $0x1c] sm:$0xf]
    %v41 = vld [vmem:[%s4] sm:$0xf]
    %v42 = vld [vmem:[%s3] sm:$0xff]
    %v43 = vld [vmem:[%s3 + $0x8] sm:$0xff]
    %v44 = vld [vmem:[%s3 + $0x10] sm:$0xff]
    %v45 = vld [vmem:[%s3 + $0x18] sm:$0xff]
    %v46 = vld [vmem:[%s3 + $0x20] sm:$0xff]
    %v47 = vld [vmem:[%s3 + $0x28] sm:$0xff]
    %v48 = vld [vmem:[%s3 + $0x30] sm:$0xff]
    %v49 = vld [vmem:[%s3 + $0x38] sm:$0xff]
    %v50 = vld [vmem:[%s5] sm:$0xff]
    %v51 = vld [vmem:[%s0] sm:$0xff]
    %v52 = vld [vmem:[%s0 + $0x8] sm:$0xff]
    %v61 = vunpack.c.l.b16 %v25
    %v62 = vunpack.c.l.b16 %v26
    %v63 = vunpack.c.l.b16 %v27
    %v64 = vunpack.c.l.b16 %v28
    %v65 = vunpack.c.l.b16 %v29
    %v66 = vunpack.c.l.b16 %v30
    %v67 = vunpack.c.l.b16 %v31
    %v68 = vunpack.c.l.b16 %v32
    %v69 = vpack.c.b16 %v62, %v61
    %v70 = vpack.c.b16 %v64, %v63
    %v71 = vpack.c.b16 %v66, %v65
    %v72 = vpack.c.b16 %v68, %v67
    %v75 = vunpack.c.l.b16 %v51
    %v76 = vunpack.c.h.b16 %v51
    %v77 = vunpack.c.l.b16 %v52
    %v78 = vunpack.c.h.b16 %v52
    %v79 = vpack.c.b16 %v77, %v75
    %v80 = vpack.c.b16 %v78, %v76
    %vm83 = vcmask 130048
    %v85 = vsel %vm83, %v69, 0
    %v88 = vsel %vm83, %v70, 0
    %v91 = vsel %vm83, %v71, 0
    %v94 = vsel %vm83, %v72, 0
    %96 = vmatprep.subr.bf16.mxu0 0
    %97 = vmatpush1.bf16.msra.mxu0 0
    %98 = vmatprep.subr.bf16.mxu0 0
    %99 = vmatpush1.bf16.msra.mxu0 0
    %100 = vmatprep.subr.bf16.mxu0 0
    %101 = vmatpush1.bf16.msra.mxu0 0
    %102 = vmatprep.subr.bf16.mxu0 0
    %103 = vmatpush1.bf16.msra.mxu0 0
    %104 = vmatprep.subr.bf16.mxu0 0
    %105 = vmatpush1.bf16.msra.mxu0 0
    %106 = vmatprep.subr.bf16.mxu0 0
    %107 = vmatpush1.bf16.msra.mxu0 0
    %108 = vmatprep.subr.bf16.mxu0 0
    %109 = vmatpush1.bf16.msra.mxu0 0
    %110 = vmatprep.subr.bf16.mxu0 %v80
    %111 = vmatpush1.bf16.msra.mxu0 %v79
    %112 = vmatprep.subr.bf16.mxu0 0
    %113 = vmatpush2.bf16.msra.mxu0 0
    %114 = vmatprep.subr.bf16.mxu0 0
    %115 = vmatpush2.bf16.msra.mxu0 0
    %116 = vmatprep.subr.bf16.mxu0 0
    %117 = vmatpush2.bf16.msra.mxu0 0
    %118 = vmatprep.subr.bf16.mxu0 0
    %119 = vmatpush2.bf16.msra.mxu0 0
    %120 = vmatprep.subr.bf16.mxu0 0
    %121 = vmatpush2.bf16.msra.mxu0 0
    %122 = vmatprep.subr.bf16.mxu0 0
    %123 = vmatpush2.bf16.msra.mxu0 0
    %124 = vmatprep.subr.bf16.mxu0 0
    %125 = vmatpush2.bf16.msra.mxu0 0
    %126 = vmatprep.subr.bf16.mxu0 0
    %127 = vmatpush2.bf16.msra.mxu0 0
    %128 = vmatprep.mubr.bf16.mxu0 0
    %129 = vmatmul.mubr.bf16.gmra.mxu0 %v85
    %v130 = vpop.f32.mrf.mxu0
    %v131 = vadd.f32 0.0, %v130
    %v132 = vpop.f32.mrf.mxu0
    %v133 = vadd.f32 0.0, %v132
    %v134 = vpop.f32.mrf.mxu0
    %v135 = vadd.f32 0.0, %v134
    %v136 = vpop.f32.mrf.mxu0
    %v137 = vadd.f32 0.0, %v136
    %138 = vmatprep.mubr.bf16.mxu0 0
    %139 = vmatmul.mubr.bf16.gmra.mxu0 %v88
    %v140 = vpop.f32.mrf.mxu0
    %v141 = vadd.f32 0.0, %v140
    %v142 = vpop.f32.mrf.mxu0
    %v143 = vadd.f32 0.0, %v142
    %v144 = vpop.f32.mrf.mxu0
    %v145 = vadd.f32 0.0, %v144
    %v146 = vpop.f32.mrf.mxu0
    %v147 = vadd.f32 0.0, %v146
    %148 = vmatprep.mubr.bf16.mxu0 0
    %149 = vmatmul.mubr.bf16.gmra.mxu0 %v91
    %v150 = vpop.f32.mrf.mxu0
    %v151 = vadd.f32 0.0, %v150
    %v152 = vpop.f32.mrf.mxu0
    %v153 = vadd.f32 0.0, %v152
    %v154 = vpop.f32.mrf.mxu0
    %v155 = vadd.f32 0.0, %v154
    %v156 = vpop.f32.mrf.mxu0
    %v157 = vadd.f32 0.0, %v156
    %158 = vmatprep.mubr.bf16.mxu0 0
    %159 = vmatmul.mubr.bf16.gmra.mxu0 %v94
    %v160 = vpop.f32.mrf.mxu0
    %v161 = vadd.f32 0.0, %v160
    %v162 = vpop.f32.mrf.mxu0
    %v163 = vadd.f32 0.0, %v162
    %v164 = vpop.f32.mrf.mxu0
    %v165 = vadd.f32 0.0, %v164
    %v166 = vpop.f32.mrf.mxu0
    %v167 = vadd.f32 0.0, %v166
    %168 = vdwg.mxu0
    %v169 = vmax.f32 %v131, 0.0
    %v170 = vmax.f32 %v133, 0.0
    %v171 = vmax.f32 %v135, 0.0
    %v172 = vmax.f32 %v137, 0.0
    %v173 = vmax.f32 %v141, 0.0
    %v174 = vmax.f32 %v143, 0.0
    %v175 = vmax.f32 %v145, 0.0
    %v176 = vmax.f32 %v147, 0.0
    %v177 = vmax.f32 %v151, 0.0
    %v178 = vmax.f32 %v153, 0.0
    %v179 = vmax.f32 %v155, 0.0
    %v180 = vmax.f32 %v157, 0.0
    %v181 = vmax.f32 %v161, 0.0
    %v182 = vmax.f32 %v163, 0.0
    %v183 = vmax.f32 %v165, 0.0
    %v184 = vmax.f32 %v167, 0.0
    %v185 = vpack.c.bf16 %v171, %v169
    %v186 = vpack.c.bf16 %v172, %v170
    %v187 = vpack.c.bf16 %v175, %v173
    %v188 = vpack.c.bf16 %v176, %v174
    %v189 = vpack.c.bf16 %v179, %v177
    %v190 = vpack.c.bf16 %v180, %v178
    %v191 = vpack.c.bf16 %v183, %v181
    %v192 = vpack.c.bf16 %v184, %v182
    %194 = vset.pattern.permute.xlu0 0
    %195 = vperm.xlu0 %194, %v42
    %v196 = vpop.permute.xlu0 %195
    %199 = vset.pattern.permute.xlu0 0
    %200 = vperm.xlu0 %199, %v43
    %v201 = vpop.permute.xlu0 %200
    %204 = vset.pattern.permute.xlu0 0
    %205 = vperm.xlu0 %204, %v44
    %v206 = vpop.permute.xlu0 %205
    %209 = vset.pattern.permute.xlu0 0
    %210 = vperm.xlu0 %209, %v45
    %v211 = vpop.permute.xlu0 %210
    %214 = vset.pattern.permute.xlu0 0
    %215 = vperm.xlu0 %214, %v46
    %v216 = vpop.permute.xlu0 %215
    %219 = vset.pattern.permute.xlu0 0
    %220 = vperm.xlu0 %219, %v47
    %v221 = vpop.permute.xlu0 %220
    %224 = vset.pattern.permute.xlu0 0
    %225 = vperm.xlu0 %224, %v48
    %v226 = vpop.permute.xlu0 %225
    %229 = vset.pattern.permute.xlu0 0
    %230 = vperm.xlu0 %229, %v49
    %v231 = vpop.permute.xlu0 %230
    %v241 = vunpack.c.l.b16 %v33
    %v242 = vunpack.c.l.b16 %v34
    %v243 = vunpack.c.l.b16 %v35
    %v244 = vunpack.c.l.b16 %v36
    %v245 = vunpack.c.l.b16 %v37
    %v246 = vunpack.c.l.b16 %v38
    %v247 = vunpack.c.l.b16 %v39
    %v248 = vunpack.c.l.b16 %v40
    %v249 = vpack.c.b16 %v242, %v241
    %v250 = vpack.c.b16 %v244, %v243
    %v251 = vpack.c.b16 %v246, %v245
    %v252 = vpack.c.b16 %v248, %v247
    %vm253 = vcmask 523264
    %v255 = vsel %vm253, %v249, 0
    %v258 = vsel %vm253, %v250, 0
    %v261 = vsel %vm253, %v251, 0
    %v264 = vsel %vm253, %v252, 0
    %266 = vmatprep.subr.bf16.mxu0 0
    %267 = vmatpush1.bf16.msra.mxu0 0
    %268 = vmatprep.subr.bf16.mxu0 0
    %269 = vmatpush1.bf16.msra.mxu0 0
    %270 = vmatprep.subr.bf16.mxu0 0
    %271 = vmatpush1.bf16.msra.mxu0 0
    %272 = vmatprep.subr.bf16.mxu0 0
    %273 = vmatpush1.bf16.msra.mxu0 0
    %274 = vmatprep.subr.bf16.mxu0 %v192
    %275 = vmatpush1.bf16.msra.mxu0 %v191
    %276 = vmatprep.subr.bf16.mxu0 %v190
    %277 = vmatpush1.bf16.msra.mxu0 %v189
    %278 = vmatprep.subr.bf16.mxu0 %v188
    %279 = vmatpush1.bf16.msra.mxu0 %v187
    %280 = vmatprep.subr.bf16.mxu0 %v186
    %281 = vmatpush1.bf16.msra.mxu0 %v185
    %282 = vmatprep.subr.bf16.mxu0 0
    %283 = vmatpush2.bf16.msra.mxu0 0
    %284 = vmatprep.subr.bf16.mxu0 0
    %285 = vmatpush2.bf16.msra.mxu0 0
    %286 = vmatprep.subr.bf16.mxu0 0
    %287 = vmatpush2.bf16.msra.mxu0 0
    %288 = vmatprep.subr.bf16.mxu0 0
    %289 = vmatpush2.bf16.msra.mxu0 0
    %290 = vmatprep.subr.bf16.mxu0 0
    %291 = vmatpush2.bf16.msra.mxu0 0
    %292 = vmatprep.subr.bf16.mxu0 0
    %293 = vmatpush2.bf16.msra.mxu0 0
    %294 = vmatprep.subr.bf16.mxu0 0
    %295 = vmatpush2.bf16.msra.mxu0 0
    %296 = vmatprep.subr.bf16.mxu0 0
    %297 = vmatpush2.bf16.msra.mxu0 0
    %298 = vmatprep.mubr.bf16.mxu0 0
    %299 = vmatmul.mubr.bf16.gmra.mxu0 %v255
    %v300 = vpop.f32.mrf.mxu0
    %v301 = vadd.f32 %v196, %v300
    %v302 = vpop.f32.mrf.mxu0
    %v303 = vadd.f32 %v196, %v302
    %v304 = vpop.f32.mrf.mxu0
    %v305 = vadd.f32 %v201, %v304
    %v306 = vpop.f32.mrf.mxu0
    %v307 = vadd.f32 %v201, %v306
    %308 = vmatprep.mubr.bf16.mxu0 0
    %309 = vmatmul.mubr.bf16.gmra.mxu0 %v258
    %v310 = vpop.f32.mrf.mxu0
    %v311 = vadd.f32 %v206, %v310
    %v312 = vpop.f32.mrf.mxu0
    %v313 = vadd.f32 %v206, %v312
    %v314 = vpop.f32.mrf.mxu0
    %v315 = vadd.f32 %v211, %v314
    %v316 = vpop.f32.mrf.mxu0
    %v317 = vadd.f32 %v211, %v316
    %318 = vmatprep.mubr.bf16.mxu0 0
    %319 = vmatmul.mubr.bf16.gmra.mxu0 %v261
    %v320 = vpop.f32.mrf.mxu0
    %v321 = vadd.f32 %v216, %v320
    %v322 = vpop.f32.mrf.mxu0
    %v323 = vadd.f32 %v216, %v322
    %v324 = vpop.f32.mrf.mxu0
    %v325 = vadd.f32 %v221, %v324
    %v326 = vpop.f32.mrf.mxu0
    %v327 = vadd.f32 %v221, %v326
    %328 = vmatprep.mubr.bf16.mxu0 0
    %329 = vmatmul.mubr.bf16.gmra.mxu0 %v264
    %v330 = vpop.f32.mrf.mxu0
    %v331 = vadd.f32 %v226, %v330
    %v332 = vpop.f32.mrf.mxu0
    %v333 = vadd.f32 %v226, %v332
    %v334 = vpop.f32.mrf.mxu0
    %v335 = vadd.f32 %v231, %v334
    %v336 = vpop.f32.mrf.mxu0
    %v337 = vadd.f32 %v231, %v336
    %338 = vdwg.mxu0
    %v339 = vmax.f32 %v301, 0.0
    %v340 = vmax.f32 %v303, 0.0
    %v341 = vmax.f32 %v305, 0.0
    %v342 = vmax.f32 %v307, 0.0
    %v343 = vmax.f32 %v311, 0.0
    %v344 = vmax.f32 %v313, 0.0
    %v345 = vmax.f32 %v315, 0.0
    %v346 = vmax.f32 %v317, 0.0
    %v347 = vmax.f32 %v321, 0.0
    %v348 = vmax.f32 %v323, 0.0
    %v349 = vmax.f32 %v325, 0.0
    %v350 = vmax.f32 %v327, 0.0
    %v351 = vmax.f32 %v331, 0.0
    %v352 = vmax.f32 %v333, 0.0
    %v353 = vmax.f32 %v335, 0.0
    %v354 = vmax.f32 %v337, 0.0
    %v355 = vpack.c.bf16 %v341, %v339
    %v356 = vpack.c.bf16 %v342, %v340
    %v357 = vpack.c.bf16 %v345, %v343
    %v358 = vpack.c.bf16 %v346, %v344
    %v359 = vpack.c.bf16 %v349, %v347
    %v360 = vpack.c.bf16 %v350, %v348
    %v361 = vpack.c.bf16 %v353, %v351
    %v362 = vpack.c.bf16 %v354, %v352
    %364 = vset.pattern.permute.xlu0 0
    %365 = vperm.xlu0 %364, %v50
    %v366 = vpop.permute.xlu0 %365
    %v369 = vsel %vm253, %v41, 0
    %371 = vmatprep.subr.bf16.mxu0 0
    %372 = vmatpush1.bf16.msra.mxu0 0
    %373 = vmatprep.subr.bf16.mxu0 0
    %374 = vmatpush1.bf16.msra.mxu0 0
    %375 = vmatprep.subr.bf16.mxu0 0
    %376 = vmatpush1.bf16.msra.mxu0 0
    %377 = vmatprep.subr.bf16.mxu0 0
    %378 = vmatpush1.bf16.msra.mxu0 0
    %379 = vmatprep.subr.bf16.mxu0 %v362
    %380 = vmatpush1.bf16.msra.mxu0 %v361
    %381 = vmatprep.subr.bf16.mxu0 %v360
    %382 = vmatpush1.bf16.msra.mxu0 %v359
    %383 = vmatprep.subr.bf16.mxu0 %v358
    %384 = vmatpush1.bf16.msra.mxu0 %v357
    %385 = vmatprep.subr.bf16.mxu0 %v356
    %386 = vmatpush1.bf16.msra.mxu0 %v355
    %387 = vmatprep.subr.bf16.mxu0 0
    %388 = vmatpush2.bf16.msra.mxu0 0
    %389 = vmatprep.subr.bf16.mxu0 0
    %390 = vmatpush2.bf16.msra.mxu0 0
    %391 = vmatprep.subr.bf16.mxu0 0
    %392 = vmatpush2.bf16.msra.mxu0 0
    %393 = vmatprep.subr.bf16.mxu0 0
    %394 = vmatpush2.bf16.msra.mxu0 0
    %395 = vmatprep.subr.bf16.mxu0 0
    %396 = vmatpush2.bf16.msra.mxu0 0
    %397 = vmatprep.subr.bf16.mxu0 0
    %398 = vmatpush2.bf16.msra.mxu0 0
    %399 = vmatprep.subr.bf16.mxu0 0
    %400 = vmatpush2.bf16.msra.mxu0 0
    %401 = vmatprep.subr.bf16.mxu0 0
    %402 = vmatpush2.bf16.msra.mxu0 0
    %403 = vmatprep.mubr.bf16.mxu0 0
    %404 = vmatmul.mubr.bf16.gmra.mxu0 %v369
    %v405 = vpop.f32.mrf.mxu0
    %v406 = vadd.f32 %v366, %v405
    %v407 = vpop.f32.mrf.mxu0
    %v408 = vadd.f32 %v366, %v407
    %v409 = vpop.f32.mrf.mxu0
    %v410 = vpop.f32.mrf.mxu0
    %411 = vdwg.mxu0
    %412 = vst [vmem:[#allocation2] sm:$0xff] %v406
    %413 = vst [vmem:[#allocation2 + $0x8] sm:$0xff] %v408
    // Predicated region
    $region26: #{tpu_custom_call.1} parent=1 // pred_check
      _
    $region27: #{tpu_custom_call.1} parent=1 // pred_check_branch
      %415 = sbr.rel (0) target = $region29
    $region28: #{tpu_custom_call.1} parent=1 // pred_region
      %s417 = ssub.s32 256, 256
      %418 = vsyncadd [#allocation3], %s417
      %s420 = sshll.u32 [#allocation2], 4
      %s421 = int_to_ptr.vmem [resolvable:$true] %s420
      %423 = dma.vmem_to_hbm [thread:$0]  %s421, 256, %s6, [#allocation3]
    $region29: #{tpu_custom_call.1} parent=1 // pred_fallthru
      _
    // Predicated region
    $region30: #{tpu_custom_call.1} parent=1 // pred_check
      _
    $region31: #{tpu_custom_call.1} parent=1 // pred_check_branch
      %425 = sbr.rel (0) target = $region33
    $region32: #{tpu_custom_call.1} parent=1 // pred_region
      %426 = dma.done [#allocation3], 256
    $region33: #{tpu_custom_call.1} parent=1 // pred_fallthru
      _
    %427 = vsyncpa [#allocation3], 1

</llo_original>
